<compile_context>
chip_gen: v7x
topology: tpu7x:2x2x1
jax: 0.10.0
libtpu: 0.0.40
codegen_flags: <defaults>
</compile_context>

<pallas_src>
import jax
import jax.numpy as jnp
from jax.experimental import pallas as pl
from jax.experimental.pallas import tpu as pltpu


def _round_up(n, m):
    return ((n + m - 1) // m) * m


def _mlp_body(x_ref, w1_ref, b1_ref, w2_ref, b2_ref, w3_ref, b3_ref,
              w4_ref, b4_ref, o_ref, m1_ref=None, m2_ref=None, m3_ref=None):
    def relu_drop(h, m_ref):
        h = jnp.maximum(h, 0.0)                    # ReLU
        if m_ref is not None:                      # fused dropout (scaled keep-mask)
            h = h * m_ref[...]
        return h

    x = x_ref[...]                                 # (TILE_B, 1)

    # Layer 1: (TILE_B,1) x (1,N) is a rank-1 outer product -> VPU broadcast
    # multiply instead of a K=1 MXU matmul.
    h = x * w1_ref[...] + b1_ref[...]              # (TILE_B, N)
    h = relu_drop(h, m1_ref)

    # Layers 2/3: real (TILE_B,N)x(N,N) matmuls -> MXU, f32 accumulation.
    h = jnp.dot(h, w2_ref[...], preferred_element_type=jnp.float32) + b2_ref[...]
    h = relu_drop(h, m2_ref)

    h = jnp.dot(h, w3_ref[...], preferred_element_type=jnp.float32) + b3_ref[...]
    h = relu_drop(h, m3_ref)

    # Layer 4: N_out=1 -> VPU multiply + cross-lane reduce (XLU) instead of MXU.
    y = jnp.sum(h * w4_ref[...], axis=-1, keepdims=True)      # (TILE_B, 1)

    # Lane-dense store: output block is (1, TILE_B).
    o_ref[...] = (y.T + b4_ref[...]).astype(o_ref.dtype)


def _mlp_kernel_eval(x_ref, w1, b1, w2, b2, w3, b3, w4, b4, o_ref):
    _mlp_body(x_ref, w1, b1, w2, b2, w3, b3, w4, b4, o_ref)


def _mlp_kernel_train(x_ref, m1, m2, m3, w1, b1, w2, b2, w3, b3, w4, b4, o_ref):
    _mlp_body(x_ref, w1, b1, w2, b2, w3, b3, w4, b4, o_ref, m1, m2, m3)


def mlp_forward(x, params, masks=None):
    """x: (B, 1) float32.  masks: None (eval mode) or 3-tuple of (B, N) scaled keep-masks."""
    B = x.shape[0]
    N = params["w2"].shape[0]

    # Batch tiling: one resident block for small B; 512-row tiles (pipelined,
    # lane/sublane aligned, megacore-parallel) when B is large.
    if B <= 512:
        tile_b = _round_up(max(B, 8), 8)
        b_pad = tile_b
    else:
        tile_b = 512
        b_pad = _round_up(B, tile_b)
    grid = (b_pad // tile_b,)

    def pad_rows(a):
        return a if a.shape[0] == b_pad else jnp.pad(a, ((0, b_pad - a.shape[0]), (0, 0)))

    inputs = [pad_rows(x)]
    in_specs = [pl.BlockSpec((tile_b, 1), lambda i: (i, 0))]

    training = masks is not None
    if training:
        inputs += [pad_rows(m) for m in masks]
        in_specs += [pl.BlockSpec((tile_b, N), lambda i: (i, 0))] * 3

    # Weights/biases stay resident in VMEM across all batch tiles.
    inputs += [params["w1"], params["b1"], params["w2"], params["b2"],
               params["w3"], params["b3"], params["w4"], params["b4"]]
    in_specs += [
        pl.BlockSpec((1, N), lambda i: (0, 0)),   # w1 (row)
        pl.BlockSpec((1, N), lambda i: (0, 0)),   # b1
        pl.BlockSpec((N, N), lambda i: (0, 0)),   # w2 (= W2.T)
        pl.BlockSpec((1, N), lambda i: (0, 0)),   # b2
        pl.BlockSpec((N, N), lambda i: (0, 0)),   # w3 (= W3.T)
        pl.BlockSpec((1, N), lambda i: (0, 0)),   # b3
        pl.BlockSpec((1, N), lambda i: (0, 0)),   # w4 (row)
        pl.BlockSpec((1, 1), lambda i: (0, 0)),   # b4
    ]

    kernel = _mlp_kernel_train if training else _mlp_kernel_eval

    out = pl.pallas_call(
        kernel,
        grid=grid,
        out_shape=jax.ShapeDtypeStruct((1, b_pad), jnp.float32),
        in_specs=in_specs,
        out_specs=pl.BlockSpec((1, tile_b), lambda i: (0, i)),
        compiler_params=pltpu.CompilerParams(dimension_semantics=("parallel",)),
    )(*inputs)

    return out[0, :B][:, None]          # back to PyTorch's (B, 1) layout


def init_params(key, neural_num):
    """PyTorch nn.Linear-style init; weights stored in the layout the kernel consumes."""
    ks = jax.random.split(key, 8)

    def lin(kw, kb, fan_in, w_shape, b_shape):
        bound = 1.0 / float(fan_in) ** 0.5
        w = jax.random.uniform(kw, w_shape, jnp.float32, -bound, bound)
        b = jax.random.uniform(kb, b_shape, jnp.float32, -bound, bound)
        return w, b

    N = neural_num
    w1, b1 = lin(ks[0], ks[1], 1, (1, N), (1, N))   # Linear(1, N): W1.T row
    w2, b2 = lin(ks[2], ks[3], N, (N, N), (1, N))   # Linear(N, N): W2.T
    w3, b3 = lin(ks[4], ks[5], N, (N, N), (1, N))   # Linear(N, N): W3.T
    w4, b4 = lin(ks[6], ks[7], N, (1, N), (1, 1))   # Linear(N, 1): W4 row
    return dict(w1=w1, b1=b1, w2=w2, b2=b2, w3=w3, b3=b3, w4=w4, b4=b4)


def make_dropout_masks(key, batch, neural_num, p):
    """Three scaled keep-masks: exactly nn.Dropout's training-mode math."""
    keep = 1.0 - p
    keys = jax.random.split(key, 3)
    return tuple(
        jax.random.bernoulli(k, keep, (batch, neural_num)).astype(jnp.float32) / keep
        for k in keys)


def mlp_reference(x, params, masks=None):
    """Pure-JAX reference (masks=None -> eval mode)."""
    m1, m2, m3 = masks if masks is not None else (1.0, 1.0, 1.0)
    h = jnp.maximum(x @ params["w1"] + params["b1"], 0.0) * m1
    h = jnp.maximum(h @ params["w2"] + params["b2"], 0.0) * m2
    h = jnp.maximum(h @ params["w3"] + params["b3"], 0.0) * m3
    return h @ params["w4"].T + params["b4"]


if __name__ == "__main__":
    key = jax.random.PRNGKey(0)
    k_param, k_x, k_drop = jax.random.split(key, 3)

    neural_num = 32   # hidden width
    batch = 8         # number of scalar-feature samples
    dropout_p = 0.5

    params = init_params(k_param, neural_num)
    x = jax.random.normal(k_x, (batch, 1), dtype=jnp.float32)

    # Eval mode (dropout = identity) vs. pure-JAX reference.
    y_eval = jax.block_until_ready(mlp_forward(x, params))
    y_eval_ref = mlp_reference(x, params)
    assert y_eval.shape == (batch, 1)
    assert jnp.allclose(y_eval, y_eval_ref, atol=1e-4, rtol=1e-4), "eval mismatch"

    # Training mode: identical masks fed to kernel and reference -> exact check.
    masks = make_dropout_masks(k_drop, batch, neural_num, dropout_p)
    y_train = jax.block_until_ready(mlp_forward(x, params, masks=masks))
    y_train_ref = mlp_reference(x, params, masks=masks)
    assert y_train.shape == (batch, 1)
    assert jnp.all(jnp.isfinite(y_train))
    assert jnp.allclose(y_train, y_train_ref, atol=1e-4, rtol=1e-4), "train mismatch"

    print("KERNEL_OK")
</pallas_src>

<mosaic_0001>
module attributes {stable_mosaic.version = 11 : i64} {
  func.func @_mlp_kernel_eval(%arg0: i32, %arg1: memref<8x1xf32, #tpu.memory_space<vmem>>, %arg2: memref<1x32xf32, #tpu.memory_space<vmem>>, %arg3: memref<1x32xf32, #tpu.memory_space<vmem>>, %arg4: memref<32x32xf32, #tpu.memory_space<vmem>>, %arg5: memref<1x32xf32, #tpu.memory_space<vmem>>, %arg6: memref<32x32xf32, #tpu.memory_space<vmem>>, %arg7: memref<1x32xf32, #tpu.memory_space<vmem>>, %arg8: memref<1x32xf32, #tpu.memory_space<vmem>>, %arg9: memref<1x1xf32, #tpu.memory_space<vmem>>, %arg10: memref<1x8xf32, #tpu.memory_space<vmem>>) attributes {dimension_semantics = [#tpu.dimension_semantics<parallel>], iteration_bounds = array<i64: 1>, scalar_prefetch = 0 : i64, scratch_operands = 0 : i64, tpu.core_type = #tpu.core_type<tc>, window_params = [{transform_indices = @transform_0, window_bounds = array<i64: 8, 1>}, {pipeline_mode = #tpu.pipeline_mode<synchronous>, transform_indices = @transform_1, window_bounds = array<i64: 1, 32>}, {pipeline_mode = #tpu.pipeline_mode<synchronous>, transform_indices = @transform_2, window_bounds = array<i64: 1, 32>}, {pipeline_mode = #tpu.pipeline_mode<synchronous>, transform_indices = @transform_3, window_bounds = array<i64: 32, 32>}, {pipeline_mode = #tpu.pipeline_mode<synchronous>, transform_indices = @transform_4, window_bounds = array<i64: 1, 32>}, {pipeline_mode = #tpu.pipeline_mode<synchronous>, transform_indices = @transform_5, window_bounds = array<i64: 32, 32>}, {pipeline_mode = #tpu.pipeline_mode<synchronous>, transform_indices = @transform_6, window_bounds = array<i64: 1, 32>}, {pipeline_mode = #tpu.pipeline_mode<synchronous>, transform_indices = @transform_7, window_bounds = array<i64: 1, 32>}, {pipeline_mode = #tpu.pipeline_mode<synchronous>, transform_indices = @transform_8, window_bounds = array<i64: 1, 1>}, {transform_indices = @transform_9, window_bounds = array<i64: 1, 8>}]} {
    %c0 = arith.constant 0 : index
    %c0_0 = arith.constant 0 : index
    %0 = vector.load %arg1[%c0, %c0_0] : memref<8x1xf32, #tpu.memory_space<vmem>>, vector<8x1xf32>
    %c0_1 = arith.constant 0 : index
    %c0_2 = arith.constant 0 : index
    %1 = vector.load %arg2[%c0_1, %c0_2] : memref<1x32xf32, #tpu.memory_space<vmem>>, vector<1x32xf32>
    %2 = vector.broadcast %0 : vector<8x1xf32> to vector<8x32xf32>
    %3 = vector.broadcast %1 : vector<1x32xf32> to vector<8x32xf32>
    %4 = arith.mulf %2, %3 : vector<8x32xf32>
    %c0_3 = arith.constant 0 : index
    %c0_4 = arith.constant 0 : index
    %5 = vector.load %arg3[%c0_3, %c0_4] : memref<1x32xf32, #tpu.memory_space<vmem>>, vector<1x32xf32>
    %6 = vector.broadcast %5 : vector<1x32xf32> to vector<8x32xf32>
    %7 = arith.addf %4, %6 : vector<8x32xf32>
    %cst = arith.constant 0.000000e+00 : f32
    %8 = vector.broadcast %cst : f32 to vector<8x32xf32>
    %9 = arith.maximumf %7, %8 : vector<8x32xf32>
    %c0_5 = arith.constant 0 : index
    %c0_6 = arith.constant 0 : index
    %10 = vector.load %arg4[%c0_5, %c0_6] : memref<32x32xf32, #tpu.memory_space<vmem>>, vector<32x32xf32>
    %cst_7 = arith.constant dense<0.000000e+00> : vector<8x32xf32>
    %11 = tpu.matmul %9, %10, %cst_7 {dimension_numbers = #tpu.dot_dimension_numbers<[1], [0], [0], [1], [0, 0, 1, 1], [], []>} : vector<8x32xf32>, vector<32x32xf32>, vector<8x32xf32> -> vector<8x32xf32>
    %c0_8 = arith.constant 0 : index
    %c0_9 = arith.constant 0 : index
    %12 = vector.load %arg5[%c0_8, %c0_9] : memref<1x32xf32, #tpu.memory_space<vmem>>, vector<1x32xf32>
    %13 = vector.broadcast %12 : vector<1x32xf32> to vector<8x32xf32>
    %14 = arith.addf %11, %13 : vector<8x32xf32>
    %cst_10 = arith.constant 0.000000e+00 : f32
    %15 = vector.broadcast %cst_10 : f32 to vector<8x32xf32>
    %16 = arith.maximumf %14, %15 : vector<8x32xf32>
    %c0_11 = arith.constant 0 : index
    %c0_12 = arith.constant 0 : index
    %17 = vector.load %arg6[%c0_11, %c0_12] : memref<32x32xf32, #tpu.memory_space<vmem>>, vector<32x32xf32>
    %cst_13 = arith.constant dense<0.000000e+00> : vector<8x32xf32>
    %18 = tpu.matmul %16, %17, %cst_13 {dimension_numbers = #tpu.dot_dimension_numbers<[1], [0], [0], [1], [0, 0, 1, 1], [], []>} : vector<8x32xf32>, vector<32x32xf32>, vector<8x32xf32> -> vector<8x32xf32>
    %c0_14 = arith.constant 0 : index
    %c0_15 = arith.constant 0 : index
    %19 = vector.load %arg7[%c0_14, %c0_15] : memref<1x32xf32, #tpu.memory_space<vmem>>, vector<1x32xf32>
    %20 = vector.broadcast %19 : vector<1x32xf32> to vector<8x32xf32>
    %21 = arith.addf %18, %20 : vector<8x32xf32>
    %cst_16 = arith.constant 0.000000e+00 : f32
    %22 = vector.broadcast %cst_16 : f32 to vector<8x32xf32>
    %23 = arith.maximumf %21, %22 : vector<8x32xf32>
    %c0_17 = arith.constant 0 : index
    %c0_18 = arith.constant 0 : index
    %24 = vector.load %arg8[%c0_17, %c0_18] : memref<1x32xf32, #tpu.memory_space<vmem>>, vector<1x32xf32>
    %25 = vector.broadcast %24 : vector<1x32xf32> to vector<8x32xf32>
    %26 = arith.mulf %23, %25 : vector<8x32xf32>
    %cst_19 = arith.constant dense<0.000000e+00> : vector<8xf32>
    %27 = vector.multi_reduction <add>, %26, %cst_19 [1] : vector<8x32xf32> to vector<8xf32>
    %28 = vector.shape_cast %27 : vector<8xf32> to vector<8x1xf32>
    %29 = tpu.transpose %28, [1, 0] : vector<8x1xf32> -> vector<1x8xf32>
    %c0_20 = arith.constant 0 : index
    %c0_21 = arith.constant 0 : index
    %30 = vector.load %arg9[%c0_20, %c0_21] : memref<1x1xf32, #tpu.memory_space<vmem>>, vector<1x1xf32>
    %31 = vector.broadcast %30 : vector<1x1xf32> to vector<1x8xf32>
    %32 = arith.addf %29, %31 : vector<1x8xf32>
    %c0_22 = arith.constant 0 : index
    %c0_23 = arith.constant 0 : index
    %33 = vector.load %arg10[%c0_22, %c0_23] : memref<1x8xf32, #tpu.memory_space<vmem>>, vector<1x8xf32>
    tpu.vector_store %arg10[%c0_22, %c0_23], %32 {strides = array<i32>} : memref<1x8xf32, #tpu.memory_space<vmem>>, vector<1x8xf32>,
    return
  }
  func.func @transform_0(%arg0: i32) -> (i32, i32) {
    %c0_i32 = arith.constant 0 : i32
    %c0_i32_0 = arith.constant 0 : i32
    return %arg0, %c0_i32 : i32, i32
  }
  func.func @transform_1(%arg0: i32) -> (i32, i32) {
    %c0_i32 = arith.constant 0 : i32
    %c0_i32_0 = arith.constant 0 : i32
    %c0_i32_1 = arith.constant 0 : i32
    return %c0_i32, %c0_i32_0 : i32, i32
  }
  func.func @transform_2(%arg0: i32) -> (i32, i32) {
    %c0_i32 = arith.constant 0 : i32
    %c0_i32_0 = arith.constant 0 : i32
    %c0_i32_1 = arith.constant 0 : i32
    return %c0_i32, %c0_i32_0 : i32, i32
  }
  func.func @transform_3(%arg0: i32) -> (i32, i32) {
    %c0_i32 = arith.constant 0 : i32
    %c0_i32_0 = arith.constant 0 : i32
    %c0_i32_1 = arith.constant 0 : i32
    return %c0_i32, %c0_i32_0 : i32, i32
  }
  func.func @transform_4(%arg0: i32) -> (i32, i32) {
    %c0_i32 = arith.constant 0 : i32
    %c0_i32_0 = arith.constant 0 : i32
    %c0_i32_1 = arith.constant 0 : i32
    return %c0_i32, %c0_i32_0 : i32, i32
  }
  func.func @transform_5(%arg0: i32) -> (i32, i32) {
    %c0_i32 = arith.constant 0 : i32
    %c0_i32_0 = arith.constant 0 : i32
    %c0_i32_1 = arith.constant 0 : i32
    return %c0_i32, %c0_i32_0 : i32, i32
  }
  func.func @transform_6(%arg0: i32) -> (i32, i32) {
    %c0_i32 = arith.constant 0 : i32
    %c0_i32_0 = arith.constant 0 : i32
    %c0_i32_1 = arith.constant 0 : i32
    return %c0_i32, %c0_i32_0 : i32, i32
  }
  func.func @transform_7(%arg0: i32) -> (i32, i32) {
    %c0_i32 = arith.constant 0 : i32
    %c0_i32_0 = arith.constant 0 : i32
    %c0_i32_1 = arith.constant 0 : i32
    return %c0_i32, %c0_i32_0 : i32, i32
  }
  func.func @transform_8(%arg0: i32) -> (i32, i32) {
    %c0_i32 = arith.constant 0 : i32
    %c0_i32_0 = arith.constant 0 : i32
    %c0_i32_1 = arith.constant 0 : i32
    return %c0_i32, %c0_i32_0 : i32, i32
  }
  func.func @transform_9(%arg0: i32) -> (i32, i32) {
    %c0_i32 = arith.constant 0 : i32
    %c0_i32_0 = arith.constant 0 : i32
    return %c0_i32, %arg0 : i32, i32
  }
}

</mosaic_0001>

<llo_original>
// kernel: tpu_custom_call.1
$region0: #{tpu_custom_call.1}
  #allocation0 [shape = 'u32[]', space=smem, size = 0x4, offset = 0x4, fixed_abs, tag = 'smem constant byte address 0x4 - core index']
  #allocation1 [shape = 'u32[144,128]{1,0:T(1,128)}', space=vmem, size = 0x12000, scoped, tag = 'internal scratch']
  #allocation2 [shape = 'f32[1,1]{1,0:T(1,128)S(1)}', space=vmem, size = 0x200, scoped, tag = 'scoped memory for tpu_custom_call.1']
  %s0 = inlined_call_operand.vmem [shape: f32[8,1], index: 0, kind: input, shape index: {}]
  %s1 = inlined_call_operand.vmem [shape: f32[1,32], index: 1, kind: input, shape index: {}]
  %s2 = inlined_call_operand.vmem [shape: f32[1,32], index: 2, kind: input, shape index: {}]
  %s3 = inlined_call_operand.hbm [shape: f32[32,32], index: 3, kind: input, shape index: {}]
  %s4 = inlined_call_operand.vmem [shape: f32[1,32], index: 4, kind: input, shape index: {}]
  %s5 = inlined_call_operand.hbm [shape: f32[32,32], index: 5, kind: input, shape index: {}]
  %s6 = inlined_call_operand.vmem [shape: f32[1,32], index: 6, kind: input, shape index: {}]
  %s7 = inlined_call_operand.vmem [shape: f32[1,32], index: 7, kind: input, shape index: {}]
  %s8 = inlined_call_operand.<no memory space> [shape: f32[1,1], index: 8, kind: input, shape index: {}]
  %s9 = inlined_call_operand.hbm [shape: f32[1,8], index: 9, kind: output, shape index: {}]
  %s10 = sld [smem:[#allocation0]]
  $region54: #{tpu_custom_call.1} parent=0
    _
  %s12 = ssub.s32 1, %s10
  %s13 = scalar_select 0, %s12, %s10
  %v14 = vstv %s8
  %15 = vst [vmem:[#allocation2] sm:$0x1] %v14
  $region1: #{tpu_custom_call.1} parent=0
    #allocation3 [shape = 'u8[16384]{0}', space=vmem, size = 0x4000, scoped, tag = 'input window, operand 3, single buffered']
    #allocation4 [shape = 's32[1]{0}', space=sflag, size = 0x4, scoped, tag = 'scoped memory for tpu_custom_call.1']
    #allocation5 [shape = 's32[1]{0}', space=sflag, size = 0x4, scoped, tag = 'scoped memory for tpu_custom_call.1']
    #allocation6 [shape = 'u8[16384]{0}', space=vmem, size = 0x4000, scoped, tag = 'input window, operand 5, single buffered']
    #allocation7 [shape = 's32[1]{0}', space=sflag, size = 0x4, scoped, tag = 'scoped memory for tpu_custom_call.1']
    #allocation8 [shape = 'u8[512]{0}', space=vmem, size = 0x400, scoped, tag = 'output window, operand 0, single buffered']
    %16 = vsyncpa [#allocation4], 0
    %17 = vsyncpa [#allocation7], 0
    %18 = vsyncpa [#allocation5], 0
    // Predicated region
    $region2: #{tpu_custom_call.1} parent=1 // pred_check
      _
    $region3: #{tpu_custom_call.1} parent=1 // pred_check_branch
      %20 = sbr.rel (0) target = $region5
    $region4: #{tpu_custom_call.1} parent=1 // pred_region
      _
    $region5: #{tpu_custom_call.1} parent=1 // pred_fallthru
      _
    // Predicated region
    $region6: #{tpu_custom_call.1} parent=1 // pred_check
      _
    $region7: #{tpu_custom_call.1} parent=1 // pred_check_branch
      %22 = sbr.rel (0) target = $region9
    $region8: #{tpu_custom_call.1} parent=1 // pred_region
      _
    $region9: #{tpu_custom_call.1} parent=1 // pred_fallthru
      _
    // Predicated region
    $region10: #{tpu_custom_call.1} parent=1 // pred_check
      _
    $region11: #{tpu_custom_call.1} parent=1 // pred_check_branch
      %24 = sbr.rel (0) target = $region13
    $region12: #{tpu_custom_call.1} parent=1 // pred_region
      _
    $region13: #{tpu_custom_call.1} parent=1 // pred_fallthru
      _
    // Predicated region
    $region14: #{tpu_custom_call.1} parent=1 // pred_check
      _
    $region15: #{tpu_custom_call.1} parent=1 // pred_check_branch
      %26 = sbr.rel (0) target = $region17
    $region16: #{tpu_custom_call.1} parent=1 // pred_region
      %s28 = ssub.s32 512, 512
      %29 = vsyncadd [#allocation4], %s28
      %s30 = sshll.u32 [#allocation3], 4
      %s31 = int_to_ptr.vmem [resolvable:$true] %s30
      %36 = dma.hbm_to_vmem [thread:$0]  %s3, 512, %s31, [#allocation4], 128, 128, 8
    $region17: #{tpu_custom_call.1} parent=1 // pred_fallthru
      _
    // Predicated region
    $region18: #{tpu_custom_call.1} parent=1 // pred_check
      _
    $region19: #{tpu_custom_call.1} parent=1 // pred_check_branch
      %38 = sbr.rel (0) target = $region21
    $region20: #{tpu_custom_call.1} parent=1 // pred_region
      _
    $region21: #{tpu_custom_call.1} parent=1 // pred_fallthru
      _
    // Predicated region
    $region22: #{tpu_custom_call.1} parent=1 // pred_check
      _
    $region23: #{tpu_custom_call.1} parent=1 // pred_check_branch
      %40 = sbr.rel (0) target = $region25
    $region24: #{tpu_custom_call.1} parent=1 // pred_region
      %s42 = ssub.s32 512, 512
      %43 = vsyncadd [#allocation7], %s42
      %s44 = sshll.u32 [#allocation6], 4
      %s45 = int_to_ptr.vmem [resolvable:$true] %s44
      %50 = dma.hbm_to_vmem [thread:$0]  %s5, 512, %s45, [#allocation7], 128, 128, 8
    $region25: #{tpu_custom_call.1} parent=1 // pred_fallthru
      _
    // Predicated region
    $region26: #{tpu_custom_call.1} parent=1 // pred_check
      _
    $region27: #{tpu_custom_call.1} parent=1 // pred_check_branch
      %52 = sbr.rel (0) target = $region29
    $region28: #{tpu_custom_call.1} parent=1 // pred_region
      _
    $region29: #{tpu_custom_call.1} parent=1 // pred_fallthru
      _
    // Predicated region
    $region30: #{tpu_custom_call.1} parent=1 // pred_check
      _
    $region31: #{tpu_custom_call.1} parent=1 // pred_check_branch
      %54 = sbr.rel (0) target = $region33
    $region32: #{tpu_custom_call.1} parent=1 // pred_region
      _
    $region33: #{tpu_custom_call.1} parent=1 // pred_fallthru
      _
    // Predicated region
    $region34: #{tpu_custom_call.1} parent=1 // pred_check
      _
    $region35: #{tpu_custom_call.1} parent=1 // pred_check_branch
      %56 = sbr.rel (0) target = $region37
    $region36: #{tpu_custom_call.1} parent=1 // pred_region
      _
    $region37: #{tpu_custom_call.1} parent=1 // pred_fallthru
      _
    // Predicated region
    $region38: #{tpu_custom_call.1} parent=1 // pred_check
      _
    $region39: #{tpu_custom_call.1} parent=1 // pred_check_branch
      %58 = sbr.rel (0) target = $region41
    $region40: #{tpu_custom_call.1} parent=1 // pred_region
      %59 = dma.done [#allocation4], 512
    $region41: #{tpu_custom_call.1} parent=1 // pred_fallthru
      _
    // Predicated region
    $region42: #{tpu_custom_call.1} parent=1 // pred_check
      _
    $region43: #{tpu_custom_call.1} parent=1 // pred_check_branch
      %61 = sbr.rel (0) target = $region45
    $region44: #{tpu_custom_call.1} parent=1 // pred_region
      %62 = dma.done [#allocation7], 512
    $region45: #{tpu_custom_call.1} parent=1 // pred_fallthru
      _
    %v63 = vld [vmem:[%s0] sm:$0xff]
    %v64 = vld [vmem:[%s1] sm:$0x1]
    %66 = vset.pattern.permute.xlu0 0
    %67 = vperm.xlu0 %66, %v63
    %v68 = vpop.permute.xlu0 %67
    %v71 = vlaneseq
    %v72 = vshrl.u32 %v71, 7
    %v73 = vsub.s32 0, %v72
    %v74 = vrot.slane %v64, %v73
    %v76 = vmul.f32 %v68, %v74
    %v77 = vld [vmem:[%s2] sm:$0x1]
    %v79 = vlaneseq
    %v80 = vshrl.u32 %v79, 7
    %v81 = vsub.s32 0, %v80
    %v82 = vrot.slane %v77, %v81
    %v84 = vadd.f32 %v76, %v82
    %v85 = vmax.f32 %v84, 0.0
    %v86 = vld [vmem:[#allocation3] sm:$0xff]
    %v87 = vld [vmem:[#allocation3 + $0x8] sm:$0xff]
    %v88 = vld [vmem:[#allocation3 + $0x10] sm:$0xff]
    %v89 = vld [vmem:[#allocation3 + $0x18] sm:$0xff]
    %v90 = vld [vmem:[%s4] sm:$0x1]
    %v92 = vlaneseq
    %v93 = vshrl.u32 %v92, 7
    %v94 = vsub.s32 0, %v93
    %v95 = vrot.slane %v90, %v94
    %vm97 = vcmask 261120
    %v99 = vsel %vm97, %v85, 0
    %101 = vmatprep.subr.mxu0 0.0
    %102 = vmatpush1.msra.mxu0 %v86
    %103 = vmatprep.subr.mxu0 0.0
    %104 = vmatpush1.msra.mxu0 %v87
    %105 = vmatprep.subr.mxu0 0.0
    %106 = vmatpush1.msra.mxu0 %v88
    %107 = vmatprep.subr.mxu0 0.0
    %108 = vmatpush1.msra.mxu0 %v89
    %109 = vmatprep.subr.mxu0 0.0
    %110 = vmatpush1.msra.mxu0 0.0
    %111 = vmatprep.subr.mxu0 0.0
    %112 = vmatpush1.msra.mxu0 0.0
    %113 = vmatprep.subr.mxu0 0.0
    %114 = vmatpush1.msra.mxu0 0.0
    %115 = vmatprep.subr.mxu0 0.0
    %116 = vmatpush1.msra.mxu0 0.0
    %117 = vmatprep.subr.mxu0 0.0
    %118 = vmatpush1.msra.mxu0 0.0
    %119 = vmatprep.subr.mxu0 0.0
    %120 = vmatpush1.msra.mxu0 0.0
    %121 = vmatprep.subr.mxu0 0.0
    %122 = vmatpush1.msra.mxu0 0.0
    %123 = vmatprep.subr.mxu0 0.0
    %124 = vmatpush1.msra.mxu0 0.0
    %125 = vmatprep.subr.mxu0 0.0
    %126 = vmatpush1.msra.mxu0 0.0
    %127 = vmatprep.subr.mxu0 0.0
    %128 = vmatpush1.msra.mxu0 0.0
    %129 = vmatprep.subr.mxu0 0.0
    %130 = vmatpush1.msra.mxu0 0.0
    %131 = vmatprep.subr.mxu0 0.0
    %132 = vmatpush1.msra.mxu0 0.0
    %133 = vmatprep.subr.mxu0 0.0
    %134 = vmatpush1.msra.mxu0 0.0
    %135 = vmatprep.subr.mxu0 0.0
    %136 = vmatpush1.msra.mxu0 0.0
    %137 = vmatprep.subr.mxu0 0.0
    %138 = vmatpush1.msra.mxu0 0.0
    %139 = vmatprep.subr.mxu0 0.0
    %140 = vmatpush1.msra.mxu0 0.0
    %141 = vmatprep.subr.mxu0 0.0
    %142 = vmatpush1.msra.mxu0 0.0
    %143 = vmatprep.subr.mxu0 0.0
    %144 = vmatpush1.msra.mxu0 0.0
    %145 = vmatprep.subr.mxu0 0.0
    %146 = vmatpush1.msra.mxu0 0.0
    %147 = vmatprep.subr.mxu0 0.0
    %148 = vmatpush1.msra.mxu0 0.0
    %149 = vmatprep.subr.mxu0 0.0
    %150 = vmatpush1.msra.mxu0 0.0
    %151 = vmatprep.subr.mxu0 0.0
    %152 = vmatpush1.msra.mxu0 0.0
    %153 = vmatprep.subr.mxu0 0.0
    %154 = vmatpush1.msra.mxu0 0.0
    %155 = vmatprep.subr.mxu0 0.0
    %156 = vmatpush1.msra.mxu0 0.0
    %157 = vmatprep.subr.mxu0 0.0
    %158 = vmatpush1.msra.mxu0 0.0
    %159 = vmatprep.subr.mxu0 0.0
    %160 = vmatpush1.msra.mxu0 0.0
    %161 = vmatprep.subr.mxu0 0.0
    %162 = vmatpush1.msra.mxu0 0.0
    %163 = vmatprep.subr.mxu0 0.0
    %164 = vmatpush1.msra.mxu0 0.0
    %165 = vmatprep.mubr.f32.mxu0 0.0
    %166 = vmatmul.mubr.f32.gmra.mrb[0].mxu0 %v99
    %v167 = vpop.f32.mrb[0].mxu0
    %v168 = vadd.f32 %v95, %v167
    %v169 = vpop.f32.mrb[0].mxu0
    %170 = vdwg.mxu0
    %v171 = vmax.f32 %v168, 0.0
    %v172 = vld [vmem:[#allocation6] sm:$0xff]
    %v173 = vld [vmem:[#allocation6 + $0x8] sm:$0xff]
    %v174 = vld [vmem:[#allocation6 + $0x10] sm:$0xff]
    %v175 = vld [vmem:[#allocation6 + $0x18] sm:$0xff]
    %v176 = vld [vmem:[%s6] sm:$0x1]
    %v178 = vlaneseq
    %v179 = vshrl.u32 %v178, 7
    %v180 = vsub.s32 0, %v179
    %v181 = vrot.slane %v176, %v180
    %v184 = vsel %vm97, %v171, 0
    %186 = vmatprep.subr.mxu0 0.0
    %187 = vmatpush1.msra.mxu0 %v172
    %188 = vmatprep.subr.mxu0 0.0
    %189 = vmatpush1.msra.mxu0 %v173
    %190 = vmatprep.subr.mxu0 0.0
    %191 = vmatpush1.msra.mxu0 %v174
    %192 = vmatprep.subr.mxu0 0.0
    %193 = vmatpush1.msra.mxu0 %v175
    %194 = vmatprep.subr.mxu0 0.0
    %195 = vmatpush1.msra.mxu0 0.0
    %196 = vmatprep.subr.mxu0 0.0
    %197 = vmatpush1.msra.mxu0 0.0
    %198 = vmatprep.subr.mxu0 0.0
    %199 = vmatpush1.msra.mxu0 0.0
    %200 = vmatprep.subr.mxu0 0.0
    %201 = vmatpush1.msra.mxu0 0.0
    %202 = vmatprep.subr.mxu0 0.0
    %203 = vmatpush1.msra.mxu0 0.0
    %204 = vmatprep.subr.mxu0 0.0
    %205 = vmatpush1.msra.mxu0 0.0
    %206 = vmatprep.subr.mxu0 0.0
    %207 = vmatpush1.msra.mxu0 0.0
    %208 = vmatprep.subr.mxu0 0.0
    %209 = vmatpush1.msra.mxu0 0.0
    %210 = vmatprep.subr.mxu0 0.0
    %211 = vmatpush1.msra.mxu0 0.0
    %212 = vmatprep.subr.mxu0 0.0
    %213 = vmatpush1.msra.mxu0 0.0
    %214 = vmatprep.subr.mxu0 0.0
    %215 = vmatpush1.msra.mxu0 0.0
    %216 = vmatprep.subr.mxu0 0.0
    %217 = vmatpush1.msra.mxu0 0.0
    %218 = vmatprep.subr.mxu0 0.0
    %219 = vmatpush1.msra.mxu0 0.0
    %220 = vmatprep.subr.mxu0 0.0
    %221 = vmatpush1.msra.mxu0 0.0
    %222 = vmatprep.subr.mxu0 0.0
    %223 = vmatpush1.msra.mxu0 0.0
    %224 = vmatprep.subr.mxu0 0.0
    %225 = vmatpush1.msra.mxu0 0.0
    %226 = vmatprep.subr.mxu0 0.0
    %227 = vmatpush1.msra.mxu0 0.0
    %228 = vmatprep.subr.mxu0 0.0
    %229 = vmatpush1.msra.mxu0 0.0
    %230 = vmatprep.subr.mxu0 0.0
    %231 = vmatpush1.msra.mxu0 0.0
    %232 = vmatprep.subr.mxu0 0.0
    %233 = vmatpush1.msra.mxu0 0.0
    %234 = vmatprep.subr.mxu0 0.0
    %235 = vmatpush1.msra.mxu0 0.0
    %236 = vmatprep.subr.mxu0 0.0
    %237 = vmatpush1.msra.mxu0 0.0
    %238 = vmatprep.subr.mxu0 0.0
    %239 = vmatpush1.msra.mxu0 0.0
    %240 = vmatprep.subr.mxu0 0.0
    %241 = vmatpush1.msra.mxu0 0.0
    %242 = vmatprep.subr.mxu0 0.0
    %243 = vmatpush1.msra.mxu0 0.0
    %244 = vmatprep.subr.mxu0 0.0
    %245 = vmatpush1.msra.mxu0 0.0
    %246 = vmatprep.subr.mxu0 0.0
    %247 = vmatpush1.msra.mxu0 0.0
    %248 = vmatprep.subr.mxu0 0.0
    %249 = vmatpush1.msra.mxu0 0.0
    %250 = vmatprep.mubr.f32.mxu0 0.0
    %251 = vmatmul.mubr.f32.gmra.mrb[0].mxu0 %v184
    %v252 = vpop.f32.mrb[0].mxu0
    %v253 = vadd.f32 %v181, %v252
    %v254 = vpop.f32.mrb[0].mxu0
    %255 = vdwg.mxu0
    %v256 = vmax.f32 %v253, 0.0
    %v257 = vld [vmem:[%s7] sm:$0x1]
    %v259 = vlaneseq
    %v260 = vshrl.u32 %v259, 7
    %v261 = vsub.s32 0, %v260
    %v262 = vrot.slane %v257, %v261
    %v264 = vmul.f32 %v256, %v262
    %v265 = vsel %vm97, %v264, 0.0
    %266 = vadd.xlane.f32.xlu0 %v265
    %v267 = vpop.xlane.xlu0 %266
    %268 = vxpose.xlu0.b32.start [1/16] %v267, 128
    %269 = vxpose.xlu0.b32.cont [2/16] 0.0, 128
    %270 = vxpose.xlu0.b32.cont [3/16] 0.0, 128
    %271 = vxpose.xlu0.b32.cont [4/16] 0.0, 128
    %272 = vxpose.xlu0.b32.cont [5/16] 0.0, 128
    %273 = vxpose.xlu0.b32.cont [6/16] 0.0, 128
    %274 = vxpose.xlu0.b32.cont [7/16] 0.0, 128
    %275 = vxpose.xlu0.b32.cont [8/16] 0.0, 128
    %276 = vxpose.xlu0.b32.cont [9/16] 0.0, 128
    %277 = vxpose.xlu0.b32.cont [10/16] 0.0, 128
    %278 = vxpose.xlu0.b32.cont [11/16] 0.0, 128
    %279 = vxpose.xlu0.b32.cont [12/16] 0.0, 128
    %280 = vxpose.xlu0.b32.cont [13/16] 0.0, 128
    %281 = vxpose.xlu0.b32.cont [14/16] 0.0, 128
    %282 = vxpose.xlu0.b32.cont [15/16] 0.0, 128
    %283 = vxpose.xlu0.b32.end [16/16] 0.0, 128
    %v284 = vpop.trf.xlu0
    %v285 = vpop.trf.xlu0
    %v286 = vpop.trf.xlu0
    %v287 = vpop.trf.xlu0
    %v288 = vpop.trf.xlu0
    %v289 = vpop.trf.xlu0
    %v290 = vpop.trf.xlu0
    %v291 = vpop.trf.xlu0
    %v292 = vpop.trf.xlu0
    %v293 = vpop.trf.xlu0
    %v294 = vpop.trf.xlu0
    %v295 = vpop.trf.xlu0
    %v296 = vpop.trf.xlu0
    %v297 = vpop.trf.xlu0
    %v298 = vpop.trf.xlu0
    %v299 = vpop.trf.xlu0
    %v300 = vld [vmem:[#allocation2] sm:$0x1]
    %302 = vset.pattern.permute.xlu0 0
    %303 = vperm.xlu0 %302, %v300
    %v304 = vpop.permute.xlu0 %303
    %v306 = vlaneseq
    %v307 = vshrl.u32 %v306, 7
    %v308 = vsub.s32 0, %v307
    %v309 = vrot.slane %v304, %v308
    %v310 = vadd.f32 %v284, %v309
    %vm311 = vcmask 57344
    %312 = vst.msk [vmem:[#allocation8] sm:$0x1] %vm311, %v310
    // Predicated region
    $region46: #{tpu_custom_call.1} parent=1 // pred_check
      _
    $region47: #{tpu_custom_call.1} parent=1 // pred_check_branch
      %314 = sbr.rel (0) target = $region49
    $region48: #{tpu_custom_call.1} parent=1 // pred_region
      %s316 = ssub.s32 16, 16
      %317 = vsyncadd [#allocation5], %s316
      %s319 = sshll.u32 [#allocation8], 4
      %s320 = int_to_ptr.vmem [resolvable:$true] %s319
      %322 = dma.vmem_to_hbm [thread:$0]  %s320, 16, %s9, [#allocation5]
    $region49: #{tpu_custom_call.1} parent=1 // pred_fallthru
      _
    // Predicated region
    $region50: #{tpu_custom_call.1} parent=1 // pred_check
      _
    $region51: #{tpu_custom_call.1} parent=1 // pred_check_branch
      %324 = sbr.rel (0) target = $region53
    $region52: #{tpu_custom_call.1} parent=1 // pred_region
      %325 = dma.done [#allocation5], 16
    $region53: #{tpu_custom_call.1} parent=1 // pred_fallthru
      _
    %326 = vsyncpa [#allocation4], 1
    %327 = vsyncpa [#allocation7], 1
    %328 = vsyncpa [#allocation5], 1

</llo_original>
